<compile_context>
chip_gen: v7x
topology: tpu7x:2x2x1
jax: 0.10.0
libtpu: 0.0.40
codegen_flags: <defaults>
</compile_context>

<pallas_src>
import math

import jax
import jax.numpy as jnp
from jax.experimental import pallas as pl
from jax.experimental.pallas import tpu as pltpu

EPS = float(jnp.finfo(jnp.float16).eps)  # torch.finfo(torch.float16).eps == 2**-10
TIME_PROJ_DIM = 256  # diffusers CombinedTimestepLabelEmbeddings uses 256 channels
VMEM_LIMIT = 64 << 20  # explicit scoped-VMEM limit: > v5e/v6e defaults, == v7x physical


def _pick_tile(full, target, align):
    """Largest multiple of `align` <= target that divides `full`; else `full`
    (full-extent block always satisfies the TPU tiling rule).  NOTE: the
    fallback to `full` is a perf cliff for large prime-ish extents."""
    if full <= target:
        return full
    t = (target // align) * align
    while t >= align:
        if full % t == 0:
            return t
        t -= align
    return full


def _sublane_align(dtype):
    # f32 -> 8, bf16 -> 16, int8/fp8 -> 32 rows per packed sublane group.
    return max(8, 32 // jnp.dtype(dtype).itemsize)


# ----------------------------------------------------------------------------
# Kernel 1: Linear(D, 2D) producing (gain = 1 + scale, shift), lane-tiled
# ----------------------------------------------------------------------------
def gain_shift_kernel(c_ref, wgs_ref, wsh_ref, bgs_ref, bsh_ref,
                      gain_ref, shift_ref):
    c = c_ref[...]                                             # (B, D) bf16
    gain_ref[...] = 1.0 + (jnp.dot(c, wgs_ref[...],
                                   preferred_element_type=jnp.float32)
                           + bgs_ref[...])
    shift_ref[...] = (jnp.dot(c, wsh_ref[...],
                              preferred_element_type=jnp.float32)
                      + bsh_ref[...])


def conditioning_linear(c, wgs, wsh, bgs, bsh, *, lane_tile=512):
    """c: (B, D).  Returns (gain, shift), both (B, D) float32, gain = 1 + scale."""
    B, D = c.shape
    c = c.astype(wgs.dtype)                     # tiny (B, D) cast; weights pre-cast
    TN = _pick_tile(D, lane_tile, 128)
    resident = lambda j: (0, 0)
    tiled = lambda j: (0, j)

    gain, shift = pl.pallas_call(
        gain_shift_kernel,
        out_shape=(jax.ShapeDtypeStruct((B, D), jnp.float32),
                   jax.ShapeDtypeStruct((B, D), jnp.float32)),
        grid=(pl.cdiv(D, TN),),
        in_specs=[
            pl.BlockSpec((B, D), resident),      # c (tiny, constant index)
            pl.BlockSpec((D, TN), tiled),        # lin_w scale half (bf16)
            pl.BlockSpec((D, TN), tiled),        # lin_w shift half (bf16)
            pl.BlockSpec((1, TN), tiled),        # lin_b scale half (f32)
            pl.BlockSpec((1, TN), tiled),        # lin_b shift half (f32)
        ],
        out_specs=[
            pl.BlockSpec((B, TN), tiled),        # gain = 1 + scale
            pl.BlockSpec((B, TN), tiled),        # shift
        ],
        compiler_params=pltpu.CompilerParams(
            dimension_semantics=("parallel",),   # no carry -> megacore-shardable
            vmem_limit_bytes=VMEM_LIMIT),
    )(c, wgs, wsh, bgs, bsh)
    return gain, shift


# ----------------------------------------------------------------------------
# Kernel 2: LayerNorm (no affine) + adaptive modulation, flat-grid streamed
# ----------------------------------------------------------------------------
def adaln_kernel(x_ref, gain_ref, shift_ref, o_ref):
    x = x_ref[...].astype(jnp.float32)                         # (1, TS, D)
    # One-pass stats: var = E[x^2] - mean^2, all f32 accumulation.
    mean = jnp.mean(x, axis=-1, keepdims=True)
    meansq = jnp.mean(x * x, axis=-1, keepdims=True)
    var = meansq - mean * mean                                  # unbiased=False
    inv = jax.lax.rsqrt(var + EPS)
    y = (x - mean) * (inv * gain_ref[...][:, None, :]) + shift_ref[...][:, None, :]
    o_ref[...] = y.astype(o_ref.dtype)


def ada_layer_norm_modulate(x, gain, shift, *, seq_tile=512, out_dtype=None):
    B, S, D = x.shape
    out_dtype = x.dtype if out_dtype is None else out_dtype
    TS = _pick_tile(S, seq_tile, _sublane_align(x.dtype))
    ns = pl.cdiv(S, TS)
    # Single flat parallel axis over B*ns tiles -> balanced megacore split on
    # v7x even for small/odd B; still a simple sequential stream on v5e/v6e.
    x_map = lambda i: (i // ns, i % ns, 0)
    c_map = lambda i: (i // ns, 0)
    return pl.pallas_call(
        adaln_kernel,
        out_shape=jax.ShapeDtypeStruct((B, S, D), out_dtype),
        grid=(B * ns,),
        in_specs=[
            pl.BlockSpec((1, TS, D), x_map),
            pl.BlockSpec((1, D), c_map),
            pl.BlockSpec((1, D), c_map),
        ],
        out_specs=pl.BlockSpec((1, TS, D), x_map),
        compiler_params=pltpu.CompilerParams(
            dimension_semantics=("parallel",),
            vmem_limit_bytes=VMEM_LIMIT),
    )(x, gain, shift)


# ----------------------------------------------------------------------------
# Plain-JAX glue (sinusoidal proj, tiny timestep MLP, embedding gather)
# ----------------------------------------------------------------------------
def timestep_sinusoidal(timesteps, dim=TIME_PROJ_DIM):
    # Timesteps(num_channels=256, flip_sin_to_cos=True, downscale_freq_shift=1)
    half = dim // 2
    exponent = -math.log(10000.0) * jnp.arange(half, dtype=jnp.float32)
    exponent = exponent / (half - 1.0)
    freqs = jnp.exp(exponent)
    args = timesteps.astype(jnp.float32)[:, None] * freqs[None, :]
    emb = jnp.concatenate([jnp.sin(args), jnp.cos(args)], axis=-1)
    emb = jnp.concatenate([emb[:, half:], emb[:, :half]], axis=-1)  # [cos, sin]
    return emb


def conditioning_vector(params, timestep, cond):
    """c = SiLU(timestep_embedding + class_embedding), all tiny O(B*D) work."""
    t_proj = timestep_sinusoidal(timestep)                     # (B, 256)
    h = jax.nn.silu(t_proj @ params["te_w1"] + params["te_b1"])
    t_emb = h @ params["te_w2"] + params["te_b2"]
    # TODO(synk): training-time label dropout (cfg-row substitution) not implemented.
    c = t_emb + params["class_emb"][cond]                      # gather glue
    return jax.nn.silu(c)                                      # (B, D) f32


def init_params(key, embedding_dim, num_embeddings):
    """f32 params matching the PyTorch module's parameter set."""
    D = embedding_dim
    ks = jax.random.split(key, 7)
    s = 0.02
    return {
        # TimestepEmbedding: Linear(256, D), SiLU, Linear(D, D)
        "te_w1": jax.random.normal(ks[0], (TIME_PROJ_DIM, D), jnp.float32) * s,
        "te_b1": jax.random.normal(ks[1], (1, D), jnp.float32) * s,
        "te_w2": jax.random.normal(ks[2], (D, D), jnp.float32) * s,
        "te_b2": jax.random.normal(ks[3], (1, D), jnp.float32) * s,
        # LabelEmbedding table (num_embeddings + 1 rows: dropout>0 adds cfg row)
        "class_emb": jax.random.normal(ks[4], (num_embeddings + 1, D),
                                       jnp.float32) * s,
        # self.linear: Linear(D, 2D)
        "lin_w": jax.random.normal(ks[5], (D, 2 * D), jnp.float32) * s,
        "lin_b": jax.random.normal(ks[6], (1, 2 * D), jnp.float32) * s,
    }


def prepare_params(params):
    """One-time weight prep: pre-cast the big Linear to bf16 and pre-split its
    scale/shift halves so the per-call path does no HBM-level cast/slice."""
    D = params["te_w2"].shape[0]
    lin_w, lin_b = params["lin_w"], params["lin_b"]
    prepared = dict(params)
    prepared["lin_w_scale"] = lin_w[:, :D].astype(jnp.bfloat16)
    prepared["lin_w_shift"] = lin_w[:, D:].astype(jnp.bfloat16)
    prepared["lin_b_scale"] = lin_b[:, :D]
    prepared["lin_b_shift"] = lin_b[:, D:]
    return prepared


def ada_layer_norm_tc(params, x, timestep, cond, *,
                      seq_tile=512, lane_tile=512, out_dtype=None):
    """Forward pass of AdaLayerNormTC (eval mode: no label dropout).
    `params` must come from prepare_params()."""
    c = conditioning_vector(params, timestep, cond)            # (B, D) glue
    gain, shift = conditioning_linear(
        c, params["lin_w_scale"], params["lin_w_shift"],
        params["lin_b_scale"], params["lin_b_shift"], lane_tile=lane_tile)
    return ada_layer_norm_modulate(x, gain, shift,
                                   seq_tile=seq_tile, out_dtype=out_dtype)


# ----------------------------------------------------------------------------
# Pure-JAX f32 reference for sanity checking
# ----------------------------------------------------------------------------
def reference(params, x, timestep, cond):
    D = x.shape[-1]
    t_proj = timestep_sinusoidal(timestep)
    h = jax.nn.silu(t_proj @ params["te_w1"] + params["te_b1"])
    t_emb = h @ params["te_w2"] + params["te_b2"]
    c = t_emb + params["class_emb"][cond]
    emb = jax.nn.silu(c) @ params["lin_w"] + params["lin_b"]
    scale, shift = emb[:, :D], emb[:, D:]
    xf = x.astype(jnp.float32)
    mean = jnp.mean(xf, axis=-1, keepdims=True)
    var = jnp.mean((xf - mean) ** 2, axis=-1, keepdims=True)
    xn = (xf - mean) / jnp.sqrt(var + EPS)
    return xn * (1.0 + scale[:, None, :]) + shift[:, None, :]


if __name__ == "__main__":
    B, S, D = 2, 8, 32
    num_embeddings = 10

    key = jax.random.PRNGKey(0)
    k_param, k_x, k_t, k_c = jax.random.split(key, 4)

    params = init_params(k_param, D, num_embeddings)
    kparams = prepare_params(params)                 # one-time cast/split
    x = jax.random.normal(k_x, (B, S, D), jnp.float32)
    timestep = jax.random.randint(k_t, (B,), 0, 1000)
    cond = jax.random.randint(k_c, (B,), 0, num_embeddings)

    out = ada_layer_norm_tc(kparams, x, timestep, cond)
    out = jax.block_until_ready(out)

    ref = reference(params, x, timestep, cond)
    assert out.shape == (B, S, D)
    # bf16 weights/activations in the final Linear -> loose-ish tolerance.
    assert jnp.allclose(out, ref, atol=5e-3, rtol=1e-2), "mismatch vs reference"

    print("KERNEL_OK")
</pallas_src>

<mosaic_0001>
module attributes {stable_mosaic.version = 11 : i64} {
  func.func @gain_shift_kernel(%arg0: i32, %arg1: memref<2x32xbf16, #tpu.memory_space<vmem>>, %arg2: memref<32x32xbf16, #tpu.memory_space<vmem>>, %arg3: memref<32x32xbf16, #tpu.memory_space<vmem>>, %arg4: memref<1x32xf32, #tpu.memory_space<vmem>>, %arg5: memref<1x32xf32, #tpu.memory_space<vmem>>, %arg6: memref<2x32xf32, #tpu.memory_space<vmem>>, %arg7: memref<2x32xf32, #tpu.memory_space<vmem>>) attributes {dimension_semantics = [#tpu.dimension_semantics<parallel>], iteration_bounds = array<i64: 1>, scalar_prefetch = 0 : i64, scratch_operands = 0 : i64, tpu.core_type = #tpu.core_type<tc>, window_params = [{pipeline_mode = #tpu.pipeline_mode<synchronous>, transform_indices = @transform_0, window_bounds = array<i64: 2, 32>}, {transform_indices = @transform_1, window_bounds = array<i64: 32, 32>}, {transform_indices = @transform_2, window_bounds = array<i64: 32, 32>}, {transform_indices = @transform_3, window_bounds = array<i64: 1, 32>}, {transform_indices = @transform_4, window_bounds = array<i64: 1, 32>}, {transform_indices = @transform_5, window_bounds = array<i64: 2, 32>}, {transform_indices = @transform_6, window_bounds = array<i64: 2, 32>}]} {
    %c0 = arith.constant 0 : index
    %c0_0 = arith.constant 0 : index
    %0 = vector.load %arg1[%c0, %c0_0] : memref<2x32xbf16, #tpu.memory_space<vmem>>, vector<2x32xbf16>
    %c0_1 = arith.constant 0 : index
    %c0_2 = arith.constant 0 : index
    %1 = vector.load %arg2[%c0_1, %c0_2] : memref<32x32xbf16, #tpu.memory_space<vmem>>, vector<32x32xbf16>
    %cst = arith.constant dense<0.000000e+00> : vector<2x32xf32>
    %2 = tpu.matmul %0, %1, %cst {dimension_numbers = #tpu.dot_dimension_numbers<[1], [0], [0], [1], [0, 0, 1, 1], [], []>} : vector<2x32xbf16>, vector<32x32xbf16>, vector<2x32xf32> -> vector<2x32xf32>
    %c0_3 = arith.constant 0 : index
    %c0_4 = arith.constant 0 : index
    %3 = vector.load %arg4[%c0_3, %c0_4] : memref<1x32xf32, #tpu.memory_space<vmem>>, vector<1x32xf32>
    %4 = vector.broadcast %3 : vector<1x32xf32> to vector<2x32xf32>
    %5 = arith.addf %2, %4 : vector<2x32xf32>
    %cst_5 = arith.constant 1.000000e+00 : f32
    %6 = vector.broadcast %cst_5 : f32 to vector<2x32xf32>
    %7 = arith.addf %6, %5 : vector<2x32xf32>
    %c0_6 = arith.constant 0 : index
    %c0_7 = arith.constant 0 : index
    %8 = vector.load %arg6[%c0_6, %c0_7] : memref<2x32xf32, #tpu.memory_space<vmem>>, vector<2x32xf32>
    tpu.vector_store %arg6[%c0_6, %c0_7], %7 {strides = array<i32>} : memref<2x32xf32, #tpu.memory_space<vmem>>, vector<2x32xf32>,
    %c0_8 = arith.constant 0 : index
    %c0_9 = arith.constant 0 : index
    %9 = vector.load %arg3[%c0_8, %c0_9] : memref<32x32xbf16, #tpu.memory_space<vmem>>, vector<32x32xbf16>
    %cst_10 = arith.constant dense<0.000000e+00> : vector<2x32xf32>
    %10 = tpu.matmul %0, %9, %cst_10 {dimension_numbers = #tpu.dot_dimension_numbers<[1], [0], [0], [1], [0, 0, 1, 1], [], []>} : vector<2x32xbf16>, vector<32x32xbf16>, vector<2x32xf32> -> vector<2x32xf32>
    %c0_11 = arith.constant 0 : index
    %c0_12 = arith.constant 0 : index
    %11 = vector.load %arg5[%c0_11, %c0_12] : memref<1x32xf32, #tpu.memory_space<vmem>>, vector<1x32xf32>
    %12 = vector.broadcast %11 : vector<1x32xf32> to vector<2x32xf32>
    %13 = arith.addf %10, %12 : vector<2x32xf32>
    %c0_13 = arith.constant 0 : index
    %c0_14 = arith.constant 0 : index
    %14 = vector.load %arg7[%c0_13, %c0_14] : memref<2x32xf32, #tpu.memory_space<vmem>>, vector<2x32xf32>
    tpu.vector_store %arg7[%c0_13, %c0_14], %13 {strides = array<i32>} : memref<2x32xf32, #tpu.memory_space<vmem>>, vector<2x32xf32>,
    return
  }
  func.func @transform_0(%arg0: i32) -> (i32, i32) {
    %c0_i32 = arith.constant 0 : i32
    %c0_i32_0 = arith.constant 0 : i32
    %c0_i32_1 = arith.constant 0 : i32
    return %c0_i32, %c0_i32_0 : i32, i32
  }
  func.func @transform_1(%arg0: i32) -> (i32, i32) {
    %c0_i32 = arith.constant 0 : i32
    %c0_i32_0 = arith.constant 0 : i32
    return %c0_i32, %arg0 : i32, i32
  }
  func.func @transform_2(%arg0: i32) -> (i32, i32) {
    %c0_i32 = arith.constant 0 : i32
    %c0_i32_0 = arith.constant 0 : i32
    return %c0_i32, %arg0 : i32, i32
  }
  func.func @transform_3(%arg0: i32) -> (i32, i32) {
    %c0_i32 = arith.constant 0 : i32
    %c0_i32_0 = arith.constant 0 : i32
    return %c0_i32, %arg0 : i32, i32
  }
  func.func @transform_4(%arg0: i32) -> (i32, i32) {
    %c0_i32 = arith.constant 0 : i32
    %c0_i32_0 = arith.constant 0 : i32
    return %c0_i32, %arg0 : i32, i32
  }
  func.func @transform_5(%arg0: i32) -> (i32, i32) {
    %c0_i32 = arith.constant 0 : i32
    %c0_i32_0 = arith.constant 0 : i32
    return %c0_i32, %arg0 : i32, i32
  }
  func.func @transform_6(%arg0: i32) -> (i32, i32) {
    %c0_i32 = arith.constant 0 : i32
    %c0_i32_0 = arith.constant 0 : i32
    return %c0_i32, %arg0 : i32, i32
  }
}

</mosaic_0001>

<llo_original>
// kernel: tpu_custom_call.1
$region0: #{tpu_custom_call.1}
  #allocation0 [shape = 'u32[]', space=smem, size = 0x4, offset = 0x4, fixed_abs, tag = 'smem constant byte address 0x4 - core index']
  #allocation1 [shape = 'u32[144,128]{1,0:T(1,128)}', space=vmem, size = 0x12000, scoped, tag = 'internal scratch']
  %s0 = inlined_call_operand.hbm [shape: bf16[2,32], index: 0, kind: input, shape index: {}]
  %s1 = inlined_call_operand.hbm [shape: bf16[32,32], index: 1, kind: input, shape index: {}]
  %s2 = inlined_call_operand.hbm [shape: bf16[32,32], index: 2, kind: input, shape index: {}]
  %s3 = inlined_call_operand.hbm [shape: f32[1,32], index: 3, kind: input, shape index: {}]
  %s4 = inlined_call_operand.hbm [shape: f32[1,32], index: 4, kind: input, shape index: {}]
  %s5 = inlined_call_operand.hbm [shape: f32[2,32], index: 5, kind: output, shape index: {0}]
  %s6 = inlined_call_operand.hbm [shape: f32[2,32], index: 6, kind: output, shape index: {1}]
  %7 = xla_tuple %s5, %s6
  %s8 = sld [smem:[#allocation0]]
  $region58: #{tpu_custom_call.1} parent=0
    _
  %s10 = ssub.s32 1, %s8
  %s11 = scalar_select 0, %s10, %s8
  $region1: #{tpu_custom_call.1} parent=0
    #allocation2 [shape = 'u8[512]{0}', space=vmem, size = 0x400, scoped, tag = 'input window, operand 0, single buffered']
    #allocation3 [shape = 's32[1]{0}', space=sflag, size = 0x4, scoped, tag = 'scoped memory for tpu_custom_call.1']
    #allocation4 [shape = 's32[1]{0}', space=sflag, size = 0x4, scoped, tag = 'scoped memory for tpu_custom_call.1']
    #allocation5 [shape = 'u8[8192]{0}', space=vmem, size = 0x2000, scoped, tag = 'input window, operand 1, single buffered']
    #allocation6 [shape = 's32[1]{0}', space=sflag, size = 0x4, scoped, tag = 'scoped memory for tpu_custom_call.1']
    #allocation7 [shape = 'u8[8192]{0}', space=vmem, size = 0x2000, scoped, tag = 'input window, operand 2, single buffered']
    #allocation8 [shape = 'u8[512]{0}', space=vmem, size = 0x400, scoped, tag = 'input window, operand 3, single buffered']
    #allocation9 [shape = 's32[1]{0}', space=sflag, size = 0x4, scoped, tag = 'scoped memory for tpu_custom_call.1']
    #allocation10 [shape = 'u8[512]{0}', space=vmem, size = 0x400, scoped, tag = 'input window, operand 4, single buffered']
    #allocation11 [shape = 'u8[1024]{0}', space=vmem, size = 0x400, scoped, tag = 'output window, operand 0, single buffered']
    #allocation12 [shape = 'u8[1024]{0}', space=vmem, size = 0x400, scoped, tag = 'output window, operand 1, single buffered']
    #allocation13 [shape = 's32[1]{0}', space=sflag, size = 0x4, scoped, tag = 'scoped memory for tpu_custom_call.1']
    %12 = vsyncpa [#allocation3], 0
    %13 = vsyncpa [#allocation6], 0
    %14 = vsyncpa [#allocation9], 0
    %15 = vsyncpa [#allocation4], 0
    %16 = vsyncpa [#allocation13], 0
    // Predicated region
    $region2: #{tpu_custom_call.1} parent=1 // pred_check
      _
    $region3: #{tpu_custom_call.1} parent=1 // pred_check_branch
      %18 = sbr.rel (0) target = $region5
    $region4: #{tpu_custom_call.1} parent=1 // pred_region
      %s20 = ssub.s32 16, 16
      %21 = vsyncadd [#allocation3], %s20
      %s23 = sshll.u32 [#allocation2], 4
      %s24 = int_to_ptr.vmem [resolvable:$true] %s23
      %26 = dma.hbm_to_vmem [thread:$0]  %s0, 16, %s24, [#allocation3]
    $region5: #{tpu_custom_call.1} parent=1 // pred_fallthru
      _
    // Predicated region
    $region6: #{tpu_custom_call.1} parent=1 // pred_check
      _
    $region7: #{tpu_custom_call.1} parent=1 // pred_check_branch
      %28 = sbr.rel (0) target = $region9
    $region8: #{tpu_custom_call.1} parent=1 // pred_region
      %s30 = ssub.s32 256, 256
      %31 = vsyncadd [#allocation6], %s30
      %s32 = sshll.u32 [#allocation5], 4
      %s33 = int_to_ptr.vmem [resolvable:$true] %s32
      %38 = dma.hbm_to_vmem [thread:$0]  %s1, 256, %s33, [#allocation6], 64, 64, 4
    $region9: #{tpu_custom_call.1} parent=1 // pred_fallthru
      _
    // Predicated region
    $region10: #{tpu_custom_call.1} parent=1 // pred_check
      _
    $region11: #{tpu_custom_call.1} parent=1 // pred_check_branch
      %40 = sbr.rel (0) target = $region13
    $region12: #{tpu_custom_call.1} parent=1 // pred_region
      %s42 = ssub.s32 256, 256
      %43 = vsyncadd [#allocation6], %s42
      %s44 = sshll.u32 [#allocation7], 4
      %s45 = int_to_ptr.vmem [resolvable:$true] %s44
      %50 = dma.hbm_to_vmem [thread:$0]  %s2, 256, %s45, [#allocation6], 64, 64, 4
    $region13: #{tpu_custom_call.1} parent=1 // pred_fallthru
      _
    // Predicated region
    $region14: #{tpu_custom_call.1} parent=1 // pred_check
      _
    $region15: #{tpu_custom_call.1} parent=1 // pred_check_branch
      %52 = sbr.rel (0) target = $region17
    $region16: #{tpu_custom_call.1} parent=1 // pred_region
      %s54 = ssub.s32 16, 16
      %55 = vsyncadd [#allocation9], %s54
      %s57 = sshll.u32 [#allocation8], 4
      %s58 = int_to_ptr.vmem [resolvable:$true] %s57
      %60 = dma.hbm_to_vmem [thread:$0]  %s3, 16, %s58, [#allocation9]
    $region17: #{tpu_custom_call.1} parent=1 // pred_fallthru
      _
    // Predicated region
    $region18: #{tpu_custom_call.1} parent=1 // pred_check
      _
    $region19: #{tpu_custom_call.1} parent=1 // pred_check_branch
      %62 = sbr.rel (0) target = $region21
    $region20: #{tpu_custom_call.1} parent=1 // pred_region
      %s64 = ssub.s32 16, 16
      %65 = vsyncadd [#allocation9], %s64
      %s67 = sshll.u32 [#allocation10], 4
      %s68 = int_to_ptr.vmem [resolvable:$true] %s67
      %70 = dma.hbm_to_vmem [thread:$0]  %s4, 16, %s68, [#allocation9]
    $region21: #{tpu_custom_call.1} parent=1 // pred_fallthru
      _
    // Predicated region
    $region22: #{tpu_custom_call.1} parent=1 // pred_check
      _
    $region23: #{tpu_custom_call.1} parent=1 // pred_check_branch
      %72 = sbr.rel (0) target = $region25
    $region24: #{tpu_custom_call.1} parent=1 // pred_region
      %73 = dma.done [#allocation3], 16
    $region25: #{tpu_custom_call.1} parent=1 // pred_fallthru
      _
    // Predicated region
    $region26: #{tpu_custom_call.1} parent=1 // pred_check
      _
    $region27: #{tpu_custom_call.1} parent=1 // pred_check_branch
      %75 = sbr.rel (0) target = $region29
    $region28: #{tpu_custom_call.1} parent=1 // pred_region
      %76 = dma.done [#allocation6], 256
    $region29: #{tpu_custom_call.1} parent=1 // pred_fallthru
      _
    // Predicated region
    $region30: #{tpu_custom_call.1} parent=1 // pred_check
      _
    $region31: #{tpu_custom_call.1} parent=1 // pred_check_branch
      %78 = sbr.rel (0) target = $region33
    $region32: #{tpu_custom_call.1} parent=1 // pred_region
      %79 = dma.done [#allocation6], 256
    $region33: #{tpu_custom_call.1} parent=1 // pred_fallthru
      _
    // Predicated region
    $region34: #{tpu_custom_call.1} parent=1 // pred_check
      _
    $region35: #{tpu_custom_call.1} parent=1 // pred_check_branch
      %81 = sbr.rel (0) target = $region37
    $region36: #{tpu_custom_call.1} parent=1 // pred_region
      %82 = dma.done [#allocation9], 16
    $region37: #{tpu_custom_call.1} parent=1 // pred_fallthru
      _
    // Predicated region
    $region38: #{tpu_custom_call.1} parent=1 // pred_check
      _
    $region39: #{tpu_custom_call.1} parent=1 // pred_check_branch
      %84 = sbr.rel (0) target = $region41
    $region40: #{tpu_custom_call.1} parent=1 // pred_region
      %85 = dma.done [#allocation9], 16
    $region41: #{tpu_custom_call.1} parent=1 // pred_fallthru
      _
    %v87 = vld [vmem:[#allocation2] sm:$0x1]
    %v88 = vld [vmem:[#allocation5] sm:$0xf]
    %v89 = vld [vmem:[#allocation5 + $0x4] sm:$0xf]
    %v90 = vld [vmem:[#allocation5 + $0x8] sm:$0xf]
    %v91 = vld [vmem:[#allocation5 + $0xc] sm:$0xf]
    %v92 = vld [vmem:[#allocation8] sm:$0x1]
    %v94 = vlaneseq
    %v95 = vshrl.u32 %v94, 7
    %v96 = vsub.s32 0, %v95
    %v97 = vrot.slane %v92, %v96
    %v103 = vunpack.c.l.b16 %v88
    %v104 = vunpack.c.l.b16 %v89
    %v105 = vunpack.c.l.b16 %v90
    %v106 = vunpack.c.l.b16 %v91
    %v107 = vpack.c.b16 %v104, %v103
    %v108 = vpack.c.b16 %v106, %v105
    %vm111 = vcmask 261120
    %v113 = vsel %vm111, %v87, 0
    %115 = vmatprep.subr.bf16.mxu0 0
    %116 = vmatpush1.bf16.msra.mxu0 %v107
    %117 = vmatprep.subr.bf16.mxu0 0
    %118 = vmatpush1.bf16.msra.mxu0 %v108
    %119 = vmatprep.subr.bf16.mxu0 0
    %120 = vmatpush1.bf16.msra.mxu0 0
    %121 = vmatprep.subr.bf16.mxu0 0
    %122 = vmatpush1.bf16.msra.mxu0 0
    %123 = vmatprep.subr.bf16.mxu0 0
    %124 = vmatpush1.bf16.msra.mxu0 0
    %125 = vmatprep.subr.bf16.mxu0 0
    %126 = vmatpush1.bf16.msra.mxu0 0
    %127 = vmatprep.subr.bf16.mxu0 0
    %128 = vmatpush1.bf16.msra.mxu0 0
    %129 = vmatprep.subr.bf16.mxu0 0
    %130 = vmatpush1.bf16.msra.mxu0 0
    %131 = vmatprep.subr.bf16.mxu0 0
    %132 = vmatpush1.bf16.msra.mxu0 0
    %133 = vmatprep.subr.bf16.mxu0 0
    %134 = vmatpush1.bf16.msra.mxu0 0
    %135 = vmatprep.subr.bf16.mxu0 0
    %136 = vmatpush1.bf16.msra.mxu0 0
    %137 = vmatprep.subr.bf16.mxu0 0
    %138 = vmatpush1.bf16.msra.mxu0 0
    %139 = vmatprep.subr.bf16.mxu0 0
    %140 = vmatpush1.bf16.msra.mxu0 0
    %141 = vmatprep.subr.bf16.mxu0 0
    %142 = vmatpush1.bf16.msra.mxu0 0
    %143 = vmatprep.subr.bf16.mxu0 0
    %144 = vmatpush1.bf16.msra.mxu0 0
    %145 = vmatprep.subr.bf16.mxu0 0
    %146 = vmatpush1.bf16.msra.mxu0 0
    %147 = vmatprep.mubr.bf16.mxu0 0
    %148 = vmatmul.mubr.bf16.gmra.mrb[0].mxu0 %v113
    %v149 = vpop.f32.mrb[0].mxu0
    %v150 = vadd.f32 %v97, %v149
    %v151 = vpop.f32.mrb[0].mxu0
    %v152 = vpop.f32.mrb[0].mxu0
    %v153 = vpop.f32.mrb[0].mxu0
    %154 = vdwg.mxu0
    %v155 = vadd.f32 %v150, 1.0
    %vm156 = vcmask 254976
    %157 = vst.msk [vmem:[#allocation11] sm:$0x3] %vm156, %v155
    %v158 = vld [vmem:[#allocation7] sm:$0xf]
    %v159 = vld [vmem:[#allocation7 + $0x4] sm:$0xf]
    %v160 = vld [vmem:[#allocation7 + $0x8] sm:$0xf]
    %v161 = vld [vmem:[#allocation7 + $0xc] sm:$0xf]
    %v162 = vld [vmem:[#allocation10] sm:$0x1]
    %v164 = vlaneseq
    %v165 = vshrl.u32 %v164, 7
    %v166 = vsub.s32 0, %v165
    %v167 = vrot.slane %v162, %v166
    %v173 = vunpack.c.l.b16 %v158
    %v174 = vunpack.c.l.b16 %v159
    %v175 = vunpack.c.l.b16 %v160
    %v176 = vunpack.c.l.b16 %v161
    %v177 = vpack.c.b16 %v174, %v173
    %v178 = vpack.c.b16 %v176, %v175
    %181 = vmatprep.subr.bf16.mxu0 0
    %182 = vmatpush1.bf16.msra.mxu0 %v177
    %183 = vmatprep.subr.bf16.mxu0 0
    %184 = vmatpush1.bf16.msra.mxu0 %v178
    %185 = vmatprep.subr.bf16.mxu0 0
    %186 = vmatpush1.bf16.msra.mxu0 0
    %187 = vmatprep.subr.bf16.mxu0 0
    %188 = vmatpush1.bf16.msra.mxu0 0
    %189 = vmatprep.subr.bf16.mxu0 0
    %190 = vmatpush1.bf16.msra.mxu0 0
    %191 = vmatprep.subr.bf16.mxu0 0
    %192 = vmatpush1.bf16.msra.mxu0 0
    %193 = vmatprep.subr.bf16.mxu0 0
    %194 = vmatpush1.bf16.msra.mxu0 0
    %195 = vmatprep.subr.bf16.mxu0 0
    %196 = vmatpush1.bf16.msra.mxu0 0
    %197 = vmatprep.subr.bf16.mxu0 0
    %198 = vmatpush1.bf16.msra.mxu0 0
    %199 = vmatprep.subr.bf16.mxu0 0
    %200 = vmatpush1.bf16.msra.mxu0 0
    %201 = vmatprep.subr.bf16.mxu0 0
    %202 = vmatpush1.bf16.msra.mxu0 0
    %203 = vmatprep.subr.bf16.mxu0 0
    %204 = vmatpush1.bf16.msra.mxu0 0
    %205 = vmatprep.subr.bf16.mxu0 0
    %206 = vmatpush1.bf16.msra.mxu0 0
    %207 = vmatprep.subr.bf16.mxu0 0
    %208 = vmatpush1.bf16.msra.mxu0 0
    %209 = vmatprep.subr.bf16.mxu0 0
    %210 = vmatpush1.bf16.msra.mxu0 0
    %211 = vmatprep.subr.bf16.mxu0 0
    %212 = vmatpush1.bf16.msra.mxu0 0
    %213 = vmatprep.mubr.bf16.mxu0 0
    %214 = vmatmul.mubr.bf16.gmra.mrb[0].mxu0 %v113
    %v215 = vpop.f32.mrb[0].mxu0
    %v216 = vadd.f32 %v167, %v215
    %v217 = vpop.f32.mrb[0].mxu0
    %v218 = vpop.f32.mrb[0].mxu0
    %v219 = vpop.f32.mrb[0].mxu0
    %220 = vdwg.mxu0
    %221 = vst.msk [vmem:[#allocation12] sm:$0x3] %vm156, %v216
    // Predicated region
    $region42: #{tpu_custom_call.1} parent=1 // pred_check
      _
    $region43: #{tpu_custom_call.1} parent=1 // pred_check_branch
      %223 = sbr.rel (0) target = $region45
    $region44: #{tpu_custom_call.1} parent=1 // pred_region
      %s225 = ssub.s32 32, 32
      %226 = vsyncadd [#allocation4], %s225
      %s228 = sshll.u32 [#allocation11], 4
      %s229 = int_to_ptr.vmem [resolvable:$true] %s228
      %231 = dma.vmem_to_hbm [thread:$0]  %s229, 32, %s5, [#allocation4]
    $region45: #{tpu_custom_call.1} parent=1 // pred_fallthru
      _
    // Predicated region
    $region46: #{tpu_custom_call.1} parent=1 // pred_check
      _
    $region47: #{tpu_custom_call.1} parent=1 // pred_check_branch
      %233 = sbr.rel (0) target = $region49
    $region48: #{tpu_custom_call.1} parent=1 // pred_region
      %s235 = ssub.s32 32, 32
      %236 = vsyncadd [#allocation13], %s235
      %s238 = sshll.u32 [#allocation12], 4
      %s239 = int_to_ptr.vmem [resolvable:$true] %s238
      %241 = dma.vmem_to_hbm [thread:$0]  %s239, 32, %s6, [#allocation13]
    $region49: #{tpu_custom_call.1} parent=1 // pred_fallthru
      _
    // Predicated region
    $region50: #{tpu_custom_call.1} parent=1 // pred_check
      _
    $region51: #{tpu_custom_call.1} parent=1 // pred_check_branch
      %243 = sbr.rel (0) target = $region53
    $region52: #{tpu_custom_call.1} parent=1 // pred_region
      %244 = dma.done [#allocation4], 32
    $region53: #{tpu_custom_call.1} parent=1 // pred_fallthru
      _
    // Predicated region
    $region54: #{tpu_custom_call.1} parent=1 // pred_check
      _
    $region55: #{tpu_custom_call.1} parent=1 // pred_check_branch
      %246 = sbr.rel (0) target = $region57
    $region56: #{tpu_custom_call.1} parent=1 // pred_region
      %247 = dma.done [#allocation13], 32
    $region57: #{tpu_custom_call.1} parent=1 // pred_fallthru
      _
    %248 = vsyncpa [#allocation3], 1
    %249 = vsyncpa [#allocation6], 1
    %250 = vsyncpa [#allocation9], 1
    %251 = vsyncpa [#allocation4], 1
    %252 = vsyncpa [#allocation13], 1

</llo_original>
